<compile_context>
chip_gen: v5e
topology: v5e:2x2
jax: 0.10.0
libtpu: 0.0.40
codegen_flags: <defaults>
</compile_context>

<pallas_src>
import functools
import math

import jax
import jax.numpy as jnp
from jax.experimental import pallas as pl
from jax.experimental.pallas import tpu as pltpu


def _norm_kernel(*refs, d, eps, rms_norm, has_residual, has_affine, has_bias,
                 emit_pre):
    i = 0
    x_ref = refs[i]; i += 1
    res_ref = None
    if has_residual:
        res_ref = refs[i]; i += 1
    w_ref = None
    if has_affine:
        w_ref = refs[i]; i += 1
    b_ref = None
    if has_bias:
        b_ref = refs[i]; i += 1
    out_ref = refs[i]; i += 1
    pre_ref = refs[i] if emit_pre else None

    # Residual add in the input dtype (matches torch `x = x + residual`) and the
    # pre-norm store comes straight from it -- no f32 round-trip for that stream.
    x_in = x_ref[...]
    if has_residual:
        x_in = x_in + res_ref[...]
    if emit_pre:
        pre_ref[...] = x_in.astype(pre_ref.dtype)

    # f32 only for the statistics / rsqrt (stability).  The block's last dim is
    # exactly d, so sums are exact -- no lane masking needed.
    xf = x_in.astype(jnp.float32)
    inv_d = 1.0 / d
    if rms_norm:
        ms = jnp.sum(xf * xf, axis=-1, keepdims=True) * inv_d
        y = xf * jax.lax.rsqrt(ms + eps)
    else:
        # Centered form kept for numerical stability; the iota/mask/sq temporaries
        # of the old padded path are gone, so only one extra f32 temp (xc) remains.
        mu = jnp.sum(xf, axis=-1, keepdims=True) * inv_d
        xc = xf - mu
        var = jnp.sum(xc * xc, axis=-1, keepdims=True) * inv_d
        y = xc * jax.lax.rsqrt(var + eps)

    if has_affine:
        y = y * w_ref[...].astype(jnp.float32)
        if has_bias:
            y = y + b_ref[...].astype(jnp.float32)

    out_ref[...] = y.astype(out_ref.dtype)


def _round_up(a, b):
    return ((a + b - 1) // b) * b


def _vmem_capacity_bytes():
    # v5e/v6e: 128 MiB per TensorCore, v7x: 64 MiB per TensorCore.
    try:
        return int(pltpu.get_tpu_info().vmem_capacity_bytes)
    except Exception:
        return 128 * 1024 * 1024


def super_norm(x, weight, bias, residual=None, *, sample_embed_dim=None,
               eps=1e-5, rms_norm=False, elementwise_affine=True, prenorm=False):
    """JAX/Pallas equivalent of Super_Norm.forward.

    x: (..., sample_embed_dim) array (channel-last).
    weight/bias: (super_embed_dim,) parameters; sliced to sample_embed_dim here.
    """
    d = x.shape[-1] if sample_embed_dim is None else sample_embed_dim
    assert x.shape[-1] == d, "x last dim must equal sample_embed_dim"
    if residual is not None:
        assert residual.shape == x.shape, "residual must match x's shape"

    orig_shape = x.shape
    rows = math.prod(orig_shape[:-1]) if len(orig_shape) > 1 else 1

    has_residual = residual is not None
    has_affine = elementwise_affine
    has_bias = has_affine and (bias is not None)
    emit_pre = prenorm and has_residual   # prenorm w/o residual: x_pre == x

    # Output / pre-norm dtype follows torch's promotion of (x + residual).
    comp_dtype = jnp.promote_types(x.dtype, residual.dtype) if has_residual else x.dtype
    itemsize = jnp.dtype(comp_dtype).itemsize
    mult = max(8, 32 // itemsize)          # sublane multiple: f32=8, bf16=16, i8=32

    # --- row-tile selection: generation-aware VMEM budget, f32 temps included ----
    n_streams = (1 + int(has_residual)) + (1 + int(emit_pre))   # big HBM streams
    per_row_bytes = (n_streams * 2 * d * itemsize      # double-buffered stream tiles
                     + 4 * d * 4)                      # f32 temporaries (xf, xc, y, slack)
    vmem_cap = _vmem_capacity_bytes()
    vmem_budget = vmem_cap // 2                         # 32 MiB on v7x, 64 MiB on v5e/v6e
    vmem_cap_tile = max(mult, vmem_budget // per_row_bytes)

    tile = min(1024, vmem_cap_tile, _round_up(rows, mult))
    # Keep at least ~4 grid steps (2 per v7x TensorCore) so double-buffering overlaps.
    if rows > 4 * mult:
        tile = min(tile, max(mult, rows // 4))
    tile = max(mult, (tile // mult) * mult)
    grid = (pl.cdiv(rows, tile),)          # partial edge block handled by Pallas

    # --- operands (no padding, no copies) ----------------------------------------
    x2 = x.reshape(rows, d)
    inputs = [x2]
    in_specs = [pl.BlockSpec((tile, d), lambda i: (i, 0))]

    if has_residual:
        inputs.append(residual.reshape(rows, d))
        in_specs.append(pl.BlockSpec((tile, d), lambda i: (i, 0)))
    if has_affine:
        inputs.append(weight[:d].reshape(1, d))
        in_specs.append(pl.BlockSpec((1, d), lambda i: (0, 0)))
    if has_bias:
        inputs.append(bias[:d].reshape(1, d))
        in_specs.append(pl.BlockSpec((1, d), lambda i: (0, 0)))

    out_shapes = [jax.ShapeDtypeStruct((rows, d), comp_dtype)]
    out_specs = [pl.BlockSpec((tile, d), lambda i: (i, 0))]
    if emit_pre:
        out_shapes.append(jax.ShapeDtypeStruct((rows, d), comp_dtype))
        out_specs.append(pl.BlockSpec((tile, d), lambda i: (i, 0)))

    kernel = functools.partial(
        _norm_kernel, d=d, eps=eps, rms_norm=rms_norm,
        has_residual=has_residual, has_affine=has_affine, has_bias=has_bias,
        emit_pre=emit_pre)

    # --- scheduler hints: mem-bound, tiny flop count ------------------------------
    in_bytes = rows * d * (jnp.dtype(x.dtype).itemsize
                           + (jnp.dtype(residual.dtype).itemsize if has_residual else 0))
    out_bytes = rows * d * itemsize * (1 + int(emit_pre))
    param_bytes = (int(has_affine) + int(has_bias)) * d * 4
    cost = pl.CostEstimate(
        flops=8 * rows * d,
        transcendentals=rows,
        bytes_accessed=int(in_bytes + out_bytes + param_bytes))

    vmem_need = tile * per_row_bytes + 4 * d * 4
    vmem_limit = int(min(max(vmem_need + (8 << 20), 16 << 20), vmem_cap - (8 << 20)))

    results = pl.pallas_call(
        kernel,
        out_shape=tuple(out_shapes),
        grid_spec=pltpu.PrefetchScalarGridSpec(
            num_scalar_prefetch=0,
            grid=grid,
            in_specs=in_specs,
            out_specs=out_specs,
        ),
        compiler_params=pltpu.CompilerParams(
            dimension_semantics=("parallel",),
            vmem_limit_bytes=vmem_limit),
        cost_estimate=cost,
    )(*inputs)

    out = results[0].reshape(orig_shape)

    if prenorm:
        if emit_pre:
            x_pre = results[1].reshape(orig_shape)
        else:
            x_pre = x   # no residual -> pre-norm value is the input itself
        return out, x_pre
    return out


# ---------------- pure-JAX references for validation ----------------
def _layer_norm_ref(x, w, b, eps):
    xf = x.astype(jnp.float32)
    mu = xf.mean(-1, keepdims=True)
    var = ((xf - mu) ** 2).mean(-1, keepdims=True)
    y = (xf - mu) / jnp.sqrt(var + eps)
    if w is not None:
        y = y * w
    if b is not None:
        y = y + b
    return y.astype(x.dtype)


def _rms_norm_ref(x, w, b, eps):
    xf = x.astype(jnp.float32)
    rstd = 1.0 / jnp.sqrt((xf ** 2).mean(-1, keepdims=True) + eps)
    y = xf * rstd * w
    if b is not None:
        y = y + b
    return y.astype(x.dtype)


if __name__ == "__main__":
    key = jax.random.PRNGKey(0)
    B, S, SUPER_E = 2, 8, 32
    sample_e = 32  # sampled sub-dimension (weight/bias sliced [:d])
    eps = 1e-5

    k1, k2, k3, k4 = jax.random.split(key, 4)
    x = jax.random.normal(k1, (B, S, sample_e), dtype=jnp.float32)
    residual = jax.random.normal(k2, (B, S, sample_e), dtype=jnp.float32)

    weight = jnp.ones((SUPER_E,), jnp.float32) + 0.01 * jnp.arange(SUPER_E, dtype=jnp.float32)
    bias = jnp.zeros((SUPER_E,), jnp.float32) + 0.001 * jnp.arange(SUPER_E, dtype=jnp.float32)

    # --- LayerNorm path with residual + prenorm ---
    out_ln, x_pre = super_norm(x, weight, bias, residual,
                               sample_embed_dim=sample_e, eps=eps,
                               rms_norm=False, prenorm=True)
    jax.block_until_ready(out_ln)
    x_sum = x + residual
    ref_ln = _layer_norm_ref(x_sum, weight[:sample_e], bias[:sample_e], eps)
    assert jnp.allclose(out_ln, ref_ln, atol=1e-5, rtol=1e-5)
    assert jnp.allclose(x_pre, x_sum, atol=1e-6, rtol=1e-6)

    # --- RMSNorm path, no residual (prenorm returns x itself, no extra store) ---
    out_rms, x_pre2 = super_norm(x, weight, bias, None,
                                 sample_embed_dim=sample_e, eps=eps,
                                 rms_norm=True, prenorm=True)
    jax.block_until_ready(out_rms)
    ref_rms = _rms_norm_ref(x, weight[:sample_e], bias[:sample_e], eps)
    assert jnp.allclose(out_rms, ref_rms, atol=1e-5, rtol=1e-5)
    assert jnp.allclose(x_pre2, x, atol=1e-6, rtol=1e-6)

    # --- elementwise_affine=False LayerNorm path ---
    out_plain = super_norm(x, weight, None, None,
                           sample_embed_dim=sample_e, eps=eps,
                           rms_norm=False, elementwise_affine=False)
    jax.block_until_ready(out_plain)
    ref_plain = _layer_norm_ref(x, None, None, eps)
    assert jnp.allclose(out_plain, ref_plain, atol=1e-5, rtol=1e-5)

    # --- sampled sub-dim (super->sample slice) + odd row count (partial edge block) ---
    sub_e = 24   # < SUPER_E, not a multiple of 128 -> exercises the no-pad lane path
    x_odd = jax.random.normal(k3, (3, 5, sub_e), dtype=jnp.float32)
    out_odd = super_norm(x_odd, weight, bias, None,
                         sample_embed_dim=sub_e, eps=eps, rms_norm=False)
    jax.block_until_ready(out_odd)
    ref_odd = _layer_norm_ref(x_odd, weight[:sub_e], bias[:sub_e], eps)
    assert jnp.allclose(out_odd, ref_odd, atol=1e-5, rtol=1e-5)

    print("KERNEL_OK")
</pallas_src>

<mosaic_0001>
module attributes {stable_mosaic.version = 11 : i64} {
  func.func @_norm_kernel(%arg0: i32, %arg1: memref<16x32xf32, #tpu.memory_space<vmem>>, %arg2: memref<16x32xf32, #tpu.memory_space<vmem>>, %arg3: memref<1x32xf32, #tpu.memory_space<vmem>>, %arg4: memref<1x32xf32, #tpu.memory_space<vmem>>, %arg5: memref<16x32xf32, #tpu.memory_space<vmem>>, %arg6: memref<16x32xf32, #tpu.memory_space<vmem>>) attributes {dimension_semantics = [#tpu.dimension_semantics<parallel>], iteration_bounds = array<i64: 1>, scalar_prefetch = 0 : i64, scratch_operands = 0 : i64, tpu.core_type = #tpu.core_type<tc>, window_params = [{transform_indices = @transform_0, window_bounds = array<i64: 16, 32>}, {transform_indices = @transform_1, window_bounds = array<i64: 16, 32>}, {pipeline_mode = #tpu.pipeline_mode<synchronous>, transform_indices = @transform_2, window_bounds = array<i64: 1, 32>}, {pipeline_mode = #tpu.pipeline_mode<synchronous>, transform_indices = @transform_3, window_bounds = array<i64: 1, 32>}, {transform_indices = @transform_4, window_bounds = array<i64: 16, 32>}, {transform_indices = @transform_5, window_bounds = array<i64: 16, 32>}]} {
    %c0 = arith.constant 0 : index
    %c0_0 = arith.constant 0 : index
    %0 = vector.load %arg1[%c0, %c0_0] : memref<16x32xf32, #tpu.memory_space<vmem>>, vector<16x32xf32>
    %c0_1 = arith.constant 0 : index
    %c0_2 = arith.constant 0 : index
    %1 = vector.load %arg2[%c0_1, %c0_2] : memref<16x32xf32, #tpu.memory_space<vmem>>, vector<16x32xf32>
    %2 = arith.addf %0, %1 : vector<16x32xf32>
    %c0_3 = arith.constant 0 : index
    %c0_4 = arith.constant 0 : index
    %3 = vector.load %arg6[%c0_3, %c0_4] : memref<16x32xf32, #tpu.memory_space<vmem>>, vector<16x32xf32>
    tpu.vector_store %arg6[%c0_3, %c0_4], %2 {strides = array<i32>} : memref<16x32xf32, #tpu.memory_space<vmem>>, vector<16x32xf32>,
    %cst = arith.constant dense<0.000000e+00> : vector<16xf32>
    %4 = vector.multi_reduction <add>, %2, %cst [1] : vector<16x32xf32> to vector<16xf32>
    %5 = vector.shape_cast %4 : vector<16xf32> to vector<16x1xf32>
    %cst_5 = arith.constant 3.125000e-02 : f32
    %6 = vector.broadcast %cst_5 : f32 to vector<16x1xf32>
    %7 = arith.mulf %5, %6 : vector<16x1xf32>
    %8 = vector.broadcast %7 : vector<16x1xf32> to vector<16x32xf32>
    %9 = arith.subf %2, %8 : vector<16x32xf32>
    %10 = arith.mulf %9, %9 : vector<16x32xf32>
    %cst_6 = arith.constant dense<0.000000e+00> : vector<16xf32>
    %11 = vector.multi_reduction <add>, %10, %cst_6 [1] : vector<16x32xf32> to vector<16xf32>
    %12 = vector.shape_cast %11 : vector<16xf32> to vector<16x1xf32>
    %cst_7 = arith.constant 3.125000e-02 : f32
    %13 = vector.broadcast %cst_7 : f32 to vector<16x1xf32>
    %14 = arith.mulf %12, %13 : vector<16x1xf32>
    %cst_8 = arith.constant 9.99999974E-6 : f32
    %15 = vector.broadcast %cst_8 : f32 to vector<16x1xf32>
    %16 = arith.addf %14, %15 : vector<16x1xf32>
    %17 = math.rsqrt %16 : vector<16x1xf32>
    %18 = vector.broadcast %17 : vector<16x1xf32> to vector<16x32xf32>
    %19 = arith.mulf %9, %18 : vector<16x32xf32>
    %c0_9 = arith.constant 0 : index
    %c0_10 = arith.constant 0 : index
    %20 = vector.load %arg3[%c0_9, %c0_10] : memref<1x32xf32, #tpu.memory_space<vmem>>, vector<1x32xf32>
    %21 = vector.broadcast %20 : vector<1x32xf32> to vector<16x32xf32>
    %22 = arith.mulf %19, %21 : vector<16x32xf32>
    %c0_11 = arith.constant 0 : index
    %c0_12 = arith.constant 0 : index
    %23 = vector.load %arg4[%c0_11, %c0_12] : memref<1x32xf32, #tpu.memory_space<vmem>>, vector<1x32xf32>
    %24 = vector.broadcast %23 : vector<1x32xf32> to vector<16x32xf32>
    %25 = arith.addf %22, %24 : vector<16x32xf32>
    %c0_13 = arith.constant 0 : index
    %c0_14 = arith.constant 0 : index
    %26 = vector.load %arg5[%c0_13, %c0_14] : memref<16x32xf32, #tpu.memory_space<vmem>>, vector<16x32xf32>
    tpu.vector_store %arg5[%c0_13, %c0_14], %25 {strides = array<i32>} : memref<16x32xf32, #tpu.memory_space<vmem>>, vector<16x32xf32>,
    return
  }
  func.func @transform_0(%arg0: i32) -> (i32, i32) {
    %c0_i32 = arith.constant 0 : i32
    %c0_i32_0 = arith.constant 0 : i32
    return %arg0, %c0_i32 : i32, i32
  }
  func.func @transform_1(%arg0: i32) -> (i32, i32) {
    %c0_i32 = arith.constant 0 : i32
    %c0_i32_0 = arith.constant 0 : i32
    return %arg0, %c0_i32 : i32, i32
  }
  func.func @transform_2(%arg0: i32) -> (i32, i32) {
    %c0_i32 = arith.constant 0 : i32
    %c0_i32_0 = arith.constant 0 : i32
    %c0_i32_1 = arith.constant 0 : i32
    return %c0_i32, %c0_i32_0 : i32, i32
  }
  func.func @transform_3(%arg0: i32) -> (i32, i32) {
    %c0_i32 = arith.constant 0 : i32
    %c0_i32_0 = arith.constant 0 : i32
    %c0_i32_1 = arith.constant 0 : i32
    return %c0_i32, %c0_i32_0 : i32, i32
  }
  func.func @transform_4(%arg0: i32) -> (i32, i32) {
    %c0_i32 = arith.constant 0 : i32
    %c0_i32_0 = arith.constant 0 : i32
    return %arg0, %c0_i32 : i32, i32
  }
  func.func @transform_5(%arg0: i32) -> (i32, i32) {
    %c0_i32 = arith.constant 0 : i32
    %c0_i32_0 = arith.constant 0 : i32
    return %arg0, %c0_i32 : i32, i32
  }
}

</mosaic_0001>

<llo_original>
// kernel: tpu_custom_call.1
$region0: #{tpu_custom_call.1}
  #allocation0 [shape = 'u32[]', space=smem, size = 0x4, offset = 0x4, fixed_abs, tag = 'smem constant byte address 0x4 - core index']
  #allocation1 [shape = 'u32[72,128]{1,0:T(1,128)}', space=vmem, size = 0x9000, scoped, tag = 'internal scratch']
  %s0 = inlined_call_operand.hbm [shape: f32[16,32], index: 0, kind: input, shape index: {}]
  %s1 = inlined_call_operand.hbm [shape: f32[16,32], index: 1, kind: input, shape index: {}]
  %s2 = inlined_call_operand.vmem [shape: f32[1,32], index: 2, kind: input, shape index: {}]
  %s3 = inlined_call_operand.vmem [shape: f32[1,32], index: 3, kind: input, shape index: {}]
  %s4 = inlined_call_operand.hbm [shape: f32[16,32], index: 4, kind: output, shape index: {0}]
  %s5 = inlined_call_operand.hbm [shape: f32[16,32], index: 5, kind: output, shape index: {1}]
  %6 = xla_tuple %s4, %s5
  %s7 = sld [smem:[#allocation0]]
  $region42: #{tpu_custom_call.1} parent=0
    _
  %s9 = ssub.s32 1, %s7
  %s10 = scalar_select 0, %s9, %s7
  $region1: #{tpu_custom_call.1} parent=0
    #allocation2 [shape = 'u8[8192]{0}', space=vmem, size = 0x2000, scoped, tag = 'input window, operand 0, single buffered']
    #allocation3 [shape = 's32[1]{0}', space=sflag, size = 0x4, scoped, tag = 'scoped memory for tpu_custom_call.1']
    #allocation4 [shape = 's32[1]{0}', space=sflag, size = 0x4, scoped, tag = 'scoped memory for tpu_custom_call.1']
    #allocation5 [shape = 'u8[8192]{0}', space=vmem, size = 0x2000, scoped, tag = 'input window, operand 1, single buffered']
    #allocation6 [shape = 's32[1]{0}', space=sflag, size = 0x4, scoped, tag = 'scoped memory for tpu_custom_call.1']
    #allocation7 [shape = 'u8[8192]{0}', space=vmem, size = 0x2000, scoped, tag = 'output window, operand 0, single buffered']
    #allocation8 [shape = 'u8[8192]{0}', space=vmem, size = 0x2000, scoped, tag = 'output window, operand 1, single buffered']
    #allocation9 [shape = 's32[1]{0}', space=sflag, size = 0x4, scoped, tag = 'scoped memory for tpu_custom_call.1']
    %11 = vsyncpa [#allocation3], 0
    %12 = vsyncpa [#allocation6], 0
    %13 = vsyncpa [#allocation4], 0
    %14 = vsyncpa [#allocation9], 0
    // Predicated region
    $region2: #{tpu_custom_call.1} parent=1 // pred_check
      _
    $region3: #{tpu_custom_call.1} parent=1 // pred_check_branch
      %16 = sbr.rel (0) target = $region5
    $region4: #{tpu_custom_call.1} parent=1 // pred_region
      %18 = vsyncadd [#allocation3], 0
      %s19 = sshll.u32 %s0, 4
      %s20 = int_to_ptr.hbm [resolvable:$true] %s19
      %s21 = sshll.u32 [#allocation2], 4
      %s22 = int_to_ptr.vmem [resolvable:$true] %s21
      %27 = dma.hbm_to_vmem [thread:$0]  %s20, 256, %s22, [#allocation3], 128, 128, 8
    $region5: #{tpu_custom_call.1} parent=1 // pred_fallthru
      _
    // Predicated region
    $region6: #{tpu_custom_call.1} parent=1 // pred_check
      _
    $region7: #{tpu_custom_call.1} parent=1 // pred_check_branch
      %29 = sbr.rel (0) target = $region9
    $region8: #{tpu_custom_call.1} parent=1 // pred_region
      %31 = vsyncadd [#allocation6], 0
      %s32 = sshll.u32 %s1, 4
      %s33 = int_to_ptr.hbm [resolvable:$true] %s32
      %s34 = sshll.u32 [#allocation5], 4
      %s35 = int_to_ptr.vmem [resolvable:$true] %s34
      %40 = dma.hbm_to_vmem [thread:$0]  %s33, 256, %s35, [#allocation6], 128, 128, 8
    $region9: #{tpu_custom_call.1} parent=1 // pred_fallthru
      _
    // Predicated region
    $region10: #{tpu_custom_call.1} parent=1 // pred_check
      _
    $region11: #{tpu_custom_call.1} parent=1 // pred_check_branch
      %42 = sbr.rel (0) target = $region13
    $region12: #{tpu_custom_call.1} parent=1 // pred_region
      _
    $region13: #{tpu_custom_call.1} parent=1 // pred_fallthru
      _
    // Predicated region
    $region14: #{tpu_custom_call.1} parent=1 // pred_check
      _
    $region15: #{tpu_custom_call.1} parent=1 // pred_check_branch
      %44 = sbr.rel (0) target = $region17
    $region16: #{tpu_custom_call.1} parent=1 // pred_region
      _
    $region17: #{tpu_custom_call.1} parent=1 // pred_fallthru
      _
    // Predicated region
    $region18: #{tpu_custom_call.1} parent=1 // pred_check
      _
    $region19: #{tpu_custom_call.1} parent=1 // pred_check_branch
      %46 = sbr.rel (0) target = $region21
    $region20: #{tpu_custom_call.1} parent=1 // pred_region
      %48 = dma.done [#allocation3], 256
    $region21: #{tpu_custom_call.1} parent=1 // pred_fallthru
      _
    // Predicated region
    $region22: #{tpu_custom_call.1} parent=1 // pred_check
      _
    $region23: #{tpu_custom_call.1} parent=1 // pred_check_branch
      %50 = sbr.rel (0) target = $region25
    $region24: #{tpu_custom_call.1} parent=1 // pred_region
      %52 = dma.done [#allocation6], 256
    $region25: #{tpu_custom_call.1} parent=1 // pred_fallthru
      _
    %v53 = vld [vmem:[#allocation2] sm:$0xff]
    %v54 = vld [vmem:[#allocation2 + $0x8] sm:$0xff]
    %v55 = vld [vmem:[#allocation5] sm:$0xff]
    %v56 = vld [vmem:[#allocation5 + $0x8] sm:$0xff]
    %v57 = vadd.f32 %v53, %v55
    %v58 = vadd.f32 %v54, %v56
    %vm59 = vcmask 261120
    %60 = vst.msk [vmem:[#allocation8] sm:$0xff] %vm59, %v57
    %61 = vst.msk [vmem:[#allocation8 + $0x8] sm:$0xff] %vm59, %v58
    %v62 = vsel %vm59, %v57, 0.0
    %63 = vadd.xlane.f32.xlu0 %v62
    %v64 = vpop.xlane.xlu0 %63
    %v65 = vsel %vm59, %v58, 0.0
    %66 = vadd.xlane.f32.xlu0 %v65
    %v67 = vpop.xlane.xlu0 %66
    %v68 = vmul.f32 %v64, 0.03125
    %v69 = vmul.f32 %v67, 0.03125
    %v70 = vsub.f32 %v57, %v68
    %v71 = vsub.f32 %v58, %v69
    %v72 = vmul.f32 %v70, %v70
    %v73 = vmul.f32 %v71, %v71
    %v74 = vsel %vm59, %v72, 0.0
    %75 = vadd.xlane.f32.xlu0 %v74
    %v76 = vpop.xlane.xlu0 %75
    %v77 = vsel %vm59, %v73, 0.0
    %78 = vadd.xlane.f32.xlu0 %v77
    %v79 = vpop.xlane.xlu0 %78
    %v80 = vmul.f32 %v76, 0.03125
    %v81 = vmul.f32 %v79, 0.03125
    %v82 = vadd.f32 %v80, 1e-05
    %v83 = vadd.f32 %v81, 1e-05
    %v84 = vrsqrt.pop %v82
    %v85 = vmul.f32 %v84, %v82
    %v86 = vmul.f32 %v85, %v84
    %v87 = vmul.f32 0.5, %v86
    %v88 = vsub.f32 1.5, %v87
    %v89 = vmul.f32 %v84, %v88
    %vm90 = vweird.f32 %v82
    %vm91 = vweird.f32 %v84
    %vm92 = vmor %vm90, %vm91
    %v93 = vsel %vm92, %v84, %v89
    %v94 = vrsqrt.pop %v83
    %v95 = vmul.f32 %v94, %v83
    %v96 = vmul.f32 %v95, %v94
    %v97 = vmul.f32 0.5, %v96
    %v98 = vsub.f32 1.5, %v97
    %v99 = vmul.f32 %v94, %v98
    %vm100 = vweird.f32 %v83
    %vm101 = vweird.f32 %v94
    %vm102 = vmor %vm100, %vm101
    %v103 = vsel %vm102, %v94, %v99
    %v104 = vmul.f32 %v70, %v93
    %v105 = vmul.f32 %v71, %v103
    %v106 = vld [vmem:[%s2] sm:$0x1]
    %v108 = vperm.slane %v106, 0
    %v110 = vmul.f32 %v104, %v108
    %v111 = vmul.f32 %v105, %v108
    %v112 = vld [vmem:[%s3] sm:$0x1]
    %v114 = vperm.slane %v112, 0
    %v116 = vadd.f32 %v110, %v114
    %v117 = vadd.f32 %v111, %v114
    %118 = vst.msk [vmem:[#allocation7] sm:$0xff] %vm59, %v116
    %119 = vst.msk [vmem:[#allocation7 + $0x8] sm:$0xff] %vm59, %v117
    // Predicated region
    $region26: #{tpu_custom_call.1} parent=1 // pred_check
      _
    $region27: #{tpu_custom_call.1} parent=1 // pred_check_branch
      %121 = sbr.rel (0) target = $region29
    $region28: #{tpu_custom_call.1} parent=1 // pred_region
      %123 = vsyncadd [#allocation4], 0
      %s124 = sshll.u32 [#allocation7], 4
      %s125 = int_to_ptr.vmem [resolvable:$true] %s124
      %s126 = sshll.u32 %s4, 4
      %s127 = int_to_ptr.hbm [resolvable:$true] %s126
      %132 = dma.vmem_to_hbm [thread:$0]  %s125, 256, %s127, [#allocation4], 128, 128, 8
    $region29: #{tpu_custom_call.1} parent=1 // pred_fallthru
      _
    // Predicated region
    $region30: #{tpu_custom_call.1} parent=1 // pred_check
      _
    $region31: #{tpu_custom_call.1} parent=1 // pred_check_branch
      %134 = sbr.rel (0) target = $region33
    $region32: #{tpu_custom_call.1} parent=1 // pred_region
      %136 = vsyncadd [#allocation9], 0
      %s137 = sshll.u32 [#allocation8], 4
      %s138 = int_to_ptr.vmem [resolvable:$true] %s137
      %s139 = sshll.u32 %s5, 4
      %s140 = int_to_ptr.hbm [resolvable:$true] %s139
      %145 = dma.vmem_to_hbm [thread:$0]  %s138, 256, %s140, [#allocation9], 128, 128, 8
    $region33: #{tpu_custom_call.1} parent=1 // pred_fallthru
      _
    // Predicated region
    $region34: #{tpu_custom_call.1} parent=1 // pred_check
      _
    $region35: #{tpu_custom_call.1} parent=1 // pred_check_branch
      %147 = sbr.rel (0) target = $region37
    $region36: #{tpu_custom_call.1} parent=1 // pred_region
      %149 = dma.done [#allocation4], 256
    $region37: #{tpu_custom_call.1} parent=1 // pred_fallthru
      _
    // Predicated region
    $region38: #{tpu_custom_call.1} parent=1 // pred_check
      _
    $region39: #{tpu_custom_call.1} parent=1 // pred_check_branch
      %151 = sbr.rel (0) target = $region41
    $region40: #{tpu_custom_call.1} parent=1 // pred_region
      %153 = dma.done [#allocation9], 256
    $region41: #{tpu_custom_call.1} parent=1 // pred_fallthru
      _
    %154 = vsyncpa [#allocation3], 1
    %155 = vsyncpa [#allocation6], 1
    %156 = vsyncpa [#allocation4], 1
    %157 = vsyncpa [#allocation9], 1

</llo_original>
